<compile_context>
chip_gen: v7x
topology: tpu7x:2x2x1
jax: 0.10.0
libtpu: 0.0.40
codegen_flags: <defaults>
</compile_context>

<pallas_src>
import jax
import jax.numpy as jnp
from jax.experimental import pallas as pl
from jax.experimental.pallas import tpu as pltpu

SUBLANE = 8     # TPU sublane width
MAX_TM = 2048   # max rows per batch tile


def _round_up(x, m):
    return -(-x // m) * m


def action_layer_kernel(i1_ref, i2_ref, wt_ref, b_ref, out_ref):
    # wt_ref is the pre-transposed weight: (2E, A).  Static slices of a Ref
    # are free views; two accumulating MXU dots replace concat([i1, i2]) @ W.T
    # without materializing the (tm, 2E) concat in VMEM.
    E = i1_ref.shape[1]
    acc = jnp.dot(i1_ref[...], wt_ref[:E, :],
                  preferred_element_type=jnp.float32)
    acc = acc + jnp.dot(i2_ref[...], wt_ref[E:, :],
                        preferred_element_type=jnp.float32)
    out_ref[...] = (acc + b_ref[...]).astype(out_ref.dtype)  # bias: 1 VPU vadd


def prepare_action_layer_params(weight, bias):
    """One-time parameter transform (hoisted out of the per-call hot path).

    weight : (A, 2E) float32  -- PyTorch nn.Linear weight layout
    bias   : (A,)    float32
    returns (wt, b2d) with shapes (2E, A), (1, A)
    """
    wt = jnp.asarray(weight, jnp.float32).T          # (2E, A)
    b2d = jnp.asarray(bias, jnp.float32)[None, :]    # (1, A)
    return wt, b2d


def action_layer(i1, i2, wt, b2d, *, small_batch_jnp_threshold=0):
    """
    i1, i2 : (B, E) float32
    wt     : (2E, A) float32   -- from prepare_action_layer_params
    b2d    : (1, A)  float32
    returns: (B, A) float32 logits
    """
    B, E = i1.shape
    twoE, A = wt.shape
    assert twoE == 2 * E and i2.shape == (B, E) and b2d.shape == (1, A)

    if B <= small_batch_jnp_threshold:
        # Tiny-batch escape hatch: kernel dispatch + the ~0.35 us grid-step
        # floor dominate the <0.1 us of real work at B ~ O(10).
        # TODO(synk): fuse this linear into the upstream kernel that produces
        # i1/i2 for RL-style single-step inference.
        return i1 @ wt[:E] + i2 @ wt[E:] + b2d

    # Batch tile selection:
    #   * B <  512 : one sublane-rounded tile, single grid step.
    #   * B >= 512 : >= 2 grid steps so both v7x TensorCores get work
    #     (no-op on single-TC v5e/v6e), tiles capped at MAX_TM rows.
    if B >= 512:
        n_tiles = max(2, pl.cdiv(B, MAX_TM))
        tm = _round_up(pl.cdiv(B, n_tiles), SUBLANE)
    else:
        tm = _round_up(B, SUBLANE)
    grid = (pl.cdiv(B, tm),)

    return pl.pallas_call(
        action_layer_kernel,
        out_shape=jax.ShapeDtypeStruct((B, A), jnp.float32),
        grid=grid,
        in_specs=[
            pl.BlockSpec((tm, E), lambda i: (i, 0)),     # i1 batch tile
            pl.BlockSpec((tm, E), lambda i: (i, 0)),     # i2 batch tile
            # Constant index_map -> grid-resident: fetched once, never
            # re-DMA'd across grid steps.
            pl.BlockSpec((twoE, A), lambda i: (0, 0)),   # weight (2E, A)
            pl.BlockSpec((1, A), lambda i: (0, 0)),      # bias   (1, A)
        ],
        out_specs=pl.BlockSpec((tm, A), lambda i: (i, 0)),
        compiler_params=pltpu.CompilerParams(
            dimension_semantics=("parallel",)),
        cost_estimate=pl.CostEstimate(
            flops=2 * B * twoE * A,
            transcendentals=0,
            bytes_accessed=4 * (2 * B * E + twoE * A + A + B * A)),
    )(i1, i2, wt, b2d)


def _reference(i1, i2, weight, bias):
    return jnp.concatenate([i1, i2], axis=1) @ weight.T + bias


if __name__ == "__main__":
    embedding_dim = 128
    num_actions = 6

    key = jax.random.PRNGKey(0)
    kw, kb, kd = jax.random.split(key, 3)

    # Deterministic synthetic Linear parameters (PyTorch-style uniform bound).
    bound = 1.0 / jnp.sqrt(2.0 * embedding_dim)
    weight = jax.random.uniform(
        kw, (num_actions, 2 * embedding_dim), minval=-bound, maxval=bound,
        dtype=jnp.float32)
    bias = jax.random.uniform(
        kb, (num_actions,), minval=-bound, maxval=bound, dtype=jnp.float32)

    # One-time parameter transform (transpose to (2E, A)), outside hot path.
    wt, b2d = prepare_action_layer_params(weight, bias)

    # Check 1: tiny batch (single grid step) -- the module's typical use.
    # Check 2: batch that divides neither the tile size nor 8, exercising the
    #          multi-step grid with a partial last block (no jnp.pad path).
    for batch in (8, 520):
        k1, k2, kd = jax.random.split(kd, 3)
        i1 = jax.random.normal(k1, (batch, embedding_dim), dtype=jnp.float32)
        i2 = jax.random.normal(k2, (batch, embedding_dim), dtype=jnp.float32)

        logits = jax.block_until_ready(action_layer(i1, i2, wt, b2d))
        ref = _reference(i1, i2, weight, bias)

        assert logits.shape == (batch, num_actions)
        assert jnp.allclose(logits, ref, atol=1e-5, rtol=1e-5), batch

    print("KERNEL_OK")
</pallas_src>

<mosaic_0001>
module attributes {stable_mosaic.version = 11 : i64} {
  func.func @action_layer_kernel(%arg0: i32, %arg1: memref<8x128xf32, #tpu.memory_space<vmem>>, %arg2: memref<8x128xf32, #tpu.memory_space<vmem>>, %arg3: memref<256x6xf32, #tpu.memory_space<vmem>>, %arg4: memref<1x6xf32, #tpu.memory_space<vmem>>, %arg5: memref<8x6xf32, #tpu.memory_space<vmem>>) attributes {dimension_semantics = [#tpu.dimension_semantics<parallel>], iteration_bounds = array<i64: 1>, scalar_prefetch = 0 : i64, scratch_operands = 0 : i64, tpu.core_type = #tpu.core_type<tc>, window_params = [{transform_indices = @transform_0, window_bounds = array<i64: 8, 128>}, {transform_indices = @transform_1, window_bounds = array<i64: 8, 128>}, {pipeline_mode = #tpu.pipeline_mode<synchronous>, transform_indices = @transform_2, window_bounds = array<i64: 256, 6>}, {pipeline_mode = #tpu.pipeline_mode<synchronous>, transform_indices = @transform_3, window_bounds = array<i64: 1, 6>}, {transform_indices = @transform_4, window_bounds = array<i64: 8, 6>}]} {
    %c0 = arith.constant 0 : index
    %c0_0 = arith.constant 0 : index
    %0 = vector.load %arg1[%c0, %c0_0] : memref<8x128xf32, #tpu.memory_space<vmem>>, vector<8x128xf32>
    %c0_1 = arith.constant 0 : index
    %c0_2 = arith.constant 0 : index
    %1 = vector.load %arg3[%c0_1, %c0_2] : memref<256x6xf32, #tpu.memory_space<vmem>>, vector<128x6xf32>
    %cst = arith.constant dense<0.000000e+00> : vector<8x6xf32>
    %2 = tpu.matmul %0, %1, %cst {dimension_numbers = #tpu.dot_dimension_numbers<[1], [0], [0], [1], [0, 0, 1, 1], [], []>} : vector<8x128xf32>, vector<128x6xf32>, vector<8x6xf32> -> vector<8x6xf32>
    %c0_3 = arith.constant 0 : index
    %c0_4 = arith.constant 0 : index
    %3 = vector.load %arg2[%c0_3, %c0_4] : memref<8x128xf32, #tpu.memory_space<vmem>>, vector<8x128xf32>
    %c128 = arith.constant 128 : index
    %c0_5 = arith.constant 0 : index
    %4 = vector.load %arg3[%c128, %c0_5] : memref<256x6xf32, #tpu.memory_space<vmem>>, vector<128x6xf32>
    %cst_6 = arith.constant dense<0.000000e+00> : vector<8x6xf32>
    %5 = tpu.matmul %3, %4, %cst_6 {dimension_numbers = #tpu.dot_dimension_numbers<[1], [0], [0], [1], [0, 0, 1, 1], [], []>} : vector<8x128xf32>, vector<128x6xf32>, vector<8x6xf32> -> vector<8x6xf32>
    %6 = arith.addf %2, %5 : vector<8x6xf32>
    %c0_7 = arith.constant 0 : index
    %c0_8 = arith.constant 0 : index
    %7 = vector.load %arg4[%c0_7, %c0_8] : memref<1x6xf32, #tpu.memory_space<vmem>>, vector<1x6xf32>
    %8 = vector.broadcast %7 : vector<1x6xf32> to vector<8x6xf32>
    %9 = arith.addf %6, %8 : vector<8x6xf32>
    %c0_9 = arith.constant 0 : index
    %c0_10 = arith.constant 0 : index
    %10 = vector.load %arg5[%c0_9, %c0_10] : memref<8x6xf32, #tpu.memory_space<vmem>>, vector<8x6xf32>
    tpu.vector_store %arg5[%c0_9, %c0_10], %9 {strides = array<i32>} : memref<8x6xf32, #tpu.memory_space<vmem>>, vector<8x6xf32>,
    return
  }
  func.func @transform_0(%arg0: i32) -> (i32, i32) {
    %c0_i32 = arith.constant 0 : i32
    %c0_i32_0 = arith.constant 0 : i32
    return %arg0, %c0_i32 : i32, i32
  }
  func.func @transform_1(%arg0: i32) -> (i32, i32) {
    %c0_i32 = arith.constant 0 : i32
    %c0_i32_0 = arith.constant 0 : i32
    return %arg0, %c0_i32 : i32, i32
  }
  func.func @transform_2(%arg0: i32) -> (i32, i32) {
    %c0_i32 = arith.constant 0 : i32
    %c0_i32_0 = arith.constant 0 : i32
    %c0_i32_1 = arith.constant 0 : i32
    return %c0_i32, %c0_i32_0 : i32, i32
  }
  func.func @transform_3(%arg0: i32) -> (i32, i32) {
    %c0_i32 = arith.constant 0 : i32
    %c0_i32_0 = arith.constant 0 : i32
    %c0_i32_1 = arith.constant 0 : i32
    return %c0_i32, %c0_i32_0 : i32, i32
  }
  func.func @transform_4(%arg0: i32) -> (i32, i32) {
    %c0_i32 = arith.constant 0 : i32
    %c0_i32_0 = arith.constant 0 : i32
    return %arg0, %c0_i32 : i32, i32
  }
}

</mosaic_0001>

<llo_original>
// kernel: tpu_custom_call.1
$region0: #{tpu_custom_call.1}
  #allocation0 [shape = 'u32[]', space=smem, size = 0x4, offset = 0x4, fixed_abs, tag = 'smem constant byte address 0x4 - core index']
  #allocation1 [shape = 'u32[144,128]{1,0:T(1,128)}', space=vmem, size = 0x12000, scoped, tag = 'internal scratch']
  %s0 = inlined_call_operand.vmem [shape: f32[8,128], index: 0, kind: input, shape index: {}]
  %s1 = inlined_call_operand.vmem [shape: f32[8,128], index: 1, kind: input, shape index: {}]
  %s2 = inlined_call_operand.vmem [shape: f32[256,6], index: 2, kind: input, shape index: {}]
  %s3 = inlined_call_operand.vmem [shape: f32[1,6], index: 3, kind: input, shape index: {}]
  %s4 = inlined_call_operand.hbm [shape: f32[8,6], index: 4, kind: output, shape index: {}]
  %s5 = sld [smem:[#allocation0]]
  $region26: #{tpu_custom_call.1} parent=0
    _
  %s7 = ssub.s32 1, %s5
  %s8 = scalar_select 0, %s7, %s5
  $region1: #{tpu_custom_call.1} parent=0
    #allocation2 [shape = 'u8[4096]{0}', space=vmem, size = 0x1000, scoped, tag = 'output window, operand 0, single buffered']
    #allocation3 [shape = 's32[1]{0}', space=sflag, size = 0x4, scoped, tag = 'scoped memory for tpu_custom_call.1']
    %9 = vsyncpa [#allocation3], 0
    // Predicated region
    $region2: #{tpu_custom_call.1} parent=1 // pred_check
      _
    $region3: #{tpu_custom_call.1} parent=1 // pred_check_branch
      %11 = sbr.rel (0) target = $region5
    $region4: #{tpu_custom_call.1} parent=1 // pred_region
      _
    $region5: #{tpu_custom_call.1} parent=1 // pred_fallthru
      _
    // Predicated region
    $region6: #{tpu_custom_call.1} parent=1 // pred_check
      _
    $region7: #{tpu_custom_call.1} parent=1 // pred_check_branch
      %13 = sbr.rel (0) target = $region9
    $region8: #{tpu_custom_call.1} parent=1 // pred_region
      _
    $region9: #{tpu_custom_call.1} parent=1 // pred_fallthru
      _
    // Predicated region
    $region10: #{tpu_custom_call.1} parent=1 // pred_check
      _
    $region11: #{tpu_custom_call.1} parent=1 // pred_check_branch
      %15 = sbr.rel (0) target = $region13
    $region12: #{tpu_custom_call.1} parent=1 // pred_region
      _
    $region13: #{tpu_custom_call.1} parent=1 // pred_fallthru
      _
    // Predicated region
    $region14: #{tpu_custom_call.1} parent=1 // pred_check
      _
    $region15: #{tpu_custom_call.1} parent=1 // pred_check_branch
      %17 = sbr.rel (0) target = $region17
    $region16: #{tpu_custom_call.1} parent=1 // pred_region
      _
    $region17: #{tpu_custom_call.1} parent=1 // pred_fallthru
      _
    %v18 = vld [vmem:[%s0] sm:$0xff]
    %v19 = vld [vmem:[%s2] sm:$0xff]
    %v20 = vld [vmem:[%s2 + $0x8] sm:$0xff]
    %v21 = vld [vmem:[%s2 + $0x10] sm:$0xff]
    %v22 = vld [vmem:[%s2 + $0x18] sm:$0xff]
    %v23 = vld [vmem:[%s2 + $0x20] sm:$0xff]
    %v24 = vld [vmem:[%s2 + $0x28] sm:$0xff]
    %v25 = vld [vmem:[%s2 + $0x30] sm:$0xff]
    %v26 = vld [vmem:[%s2 + $0x38] sm:$0xff]
    %v27 = vld [vmem:[%s2 + $0x40] sm:$0xff]
    %v28 = vld [vmem:[%s2 + $0x48] sm:$0xff]
    %v29 = vld [vmem:[%s2 + $0x50] sm:$0xff]
    %v30 = vld [vmem:[%s2 + $0x58] sm:$0xff]
    %v31 = vld [vmem:[%s2 + $0x60] sm:$0xff]
    %v32 = vld [vmem:[%s2 + $0x68] sm:$0xff]
    %v33 = vld [vmem:[%s2 + $0x70] sm:$0xff]
    %v34 = vld [vmem:[%s2 + $0x78] sm:$0xff]
    %v35 = vld [vmem:[%s1] sm:$0xff]
    %v36 = vld [vmem:[%s2 + $0x80] sm:$0xff]
    %v37 = vld [vmem:[%s2 + $0x88] sm:$0xff]
    %v38 = vld [vmem:[%s2 + $0x90] sm:$0xff]
    %v39 = vld [vmem:[%s2 + $0x98] sm:$0xff]
    %v40 = vld [vmem:[%s2 + $0xa0] sm:$0xff]
    %v41 = vld [vmem:[%s2 + $0xa8] sm:$0xff]
    %v42 = vld [vmem:[%s2 + $0xb0] sm:$0xff]
    %v43 = vld [vmem:[%s2 + $0xb8] sm:$0xff]
    %v44 = vld [vmem:[%s2 + $0xc0] sm:$0xff]
    %v45 = vld [vmem:[%s2 + $0xc8] sm:$0xff]
    %v46 = vld [vmem:[%s2 + $0xd0] sm:$0xff]
    %v47 = vld [vmem:[%s2 + $0xd8] sm:$0xff]
    %v48 = vld [vmem:[%s2 + $0xe0] sm:$0xff]
    %v49 = vld [vmem:[%s2 + $0xe8] sm:$0xff]
    %v50 = vld [vmem:[%s2 + $0xf0] sm:$0xff]
    %v51 = vld [vmem:[%s2 + $0xf8] sm:$0xff]
    %52 = vmatprep.subr.mxu0 0.0
    %53 = vmatpush1.msra.mxu0 %v36
    %54 = vmatprep.subr.mxu0 0.0
    %55 = vmatpush1.msra.mxu0 %v37
    %56 = vmatprep.subr.mxu0 0.0
    %57 = vmatpush1.msra.mxu0 %v38
    %58 = vmatprep.subr.mxu0 0.0
    %59 = vmatpush1.msra.mxu0 %v39
    %60 = vmatprep.subr.mxu0 0.0
    %61 = vmatpush1.msra.mxu0 %v40
    %62 = vmatprep.subr.mxu0 0.0
    %63 = vmatpush1.msra.mxu0 %v41
    %64 = vmatprep.subr.mxu0 0.0
    %65 = vmatpush1.msra.mxu0 %v42
    %66 = vmatprep.subr.mxu0 0.0
    %67 = vmatpush1.msra.mxu0 %v43
    %68 = vmatprep.subr.mxu0 0.0
    %69 = vmatpush1.msra.mxu0 %v44
    %70 = vmatprep.subr.mxu0 0.0
    %71 = vmatpush1.msra.mxu0 %v45
    %72 = vmatprep.subr.mxu0 0.0
    %73 = vmatpush1.msra.mxu0 %v46
    %74 = vmatprep.subr.mxu0 0.0
    %75 = vmatpush1.msra.mxu0 %v47
    %76 = vmatprep.subr.mxu0 0.0
    %77 = vmatpush1.msra.mxu0 %v48
    %78 = vmatprep.subr.mxu0 0.0
    %79 = vmatpush1.msra.mxu0 %v49
    %80 = vmatprep.subr.mxu0 0.0
    %81 = vmatpush1.msra.mxu0 %v50
    %82 = vmatprep.subr.mxu0 0.0
    %83 = vmatpush1.msra.mxu0 %v51
    %84 = vmatprep.subr.mxu0 0.0
    %85 = vmatpush1.msra.mxu0 0.0
    %86 = vmatprep.subr.mxu0 0.0
    %87 = vmatpush1.msra.mxu0 0.0
    %88 = vmatprep.subr.mxu0 0.0
    %89 = vmatpush1.msra.mxu0 0.0
    %90 = vmatprep.subr.mxu0 0.0
    %91 = vmatpush1.msra.mxu0 0.0
    %92 = vmatprep.subr.mxu0 0.0
    %93 = vmatpush1.msra.mxu0 0.0
    %94 = vmatprep.subr.mxu0 0.0
    %95 = vmatpush1.msra.mxu0 0.0
    %96 = vmatprep.subr.mxu0 0.0
    %97 = vmatpush1.msra.mxu0 0.0
    %98 = vmatprep.subr.mxu0 0.0
    %99 = vmatpush1.msra.mxu0 0.0
    %100 = vmatprep.subr.mxu0 0.0
    %101 = vmatpush1.msra.mxu0 0.0
    %102 = vmatprep.subr.mxu0 0.0
    %103 = vmatpush1.msra.mxu0 0.0
    %104 = vmatprep.subr.mxu0 0.0
    %105 = vmatpush1.msra.mxu0 0.0
    %106 = vmatprep.subr.mxu0 0.0
    %107 = vmatpush1.msra.mxu0 0.0
    %108 = vmatprep.subr.mxu0 0.0
    %109 = vmatpush1.msra.mxu0 0.0
    %110 = vmatprep.subr.mxu0 0.0
    %111 = vmatpush1.msra.mxu0 0.0
    %112 = vmatprep.subr.mxu0 0.0
    %113 = vmatpush1.msra.mxu0 0.0
    %114 = vmatprep.subr.mxu0 0.0
    %115 = vmatpush1.msra.mxu0 0.0
    %116 = vmatprep.mubr.f32.mxu0 0.0
    %117 = vmatmul.mubr.f32.gmra.mrb[0].mxu0 %v35
    %v118 = vpop.f32.mrb[0].mxu0
    %v119 = vadd.f32 0.0, %v118
    %v120 = vpop.f32.mrb[0].mxu0
    %121 = vdwg.mxu0
    %122 = vmatprep.subr.mxu0 0.0
    %123 = vmatpush1.msra.mxu0 %v19
    %124 = vmatprep.subr.mxu0 0.0
    %125 = vmatpush1.msra.mxu0 %v20
    %126 = vmatprep.subr.mxu0 0.0
    %127 = vmatpush1.msra.mxu0 %v21
    %128 = vmatprep.subr.mxu0 0.0
    %129 = vmatpush1.msra.mxu0 %v22
    %130 = vmatprep.subr.mxu0 0.0
    %131 = vmatpush1.msra.mxu0 %v23
    %132 = vmatprep.subr.mxu0 0.0
    %133 = vmatpush1.msra.mxu0 %v24
    %134 = vmatprep.subr.mxu0 0.0
    %135 = vmatpush1.msra.mxu0 %v25
    %136 = vmatprep.subr.mxu0 0.0
    %137 = vmatpush1.msra.mxu0 %v26
    %138 = vmatprep.subr.mxu0 0.0
    %139 = vmatpush1.msra.mxu0 %v27
    %140 = vmatprep.subr.mxu0 0.0
    %141 = vmatpush1.msra.mxu0 %v28
    %142 = vmatprep.subr.mxu0 0.0
    %143 = vmatpush1.msra.mxu0 %v29
    %144 = vmatprep.subr.mxu0 0.0
    %145 = vmatpush1.msra.mxu0 %v30
    %146 = vmatprep.subr.mxu0 0.0
    %147 = vmatpush1.msra.mxu0 %v31
    %148 = vmatprep.subr.mxu0 0.0
    %149 = vmatpush1.msra.mxu0 %v32
    %150 = vmatprep.subr.mxu0 0.0
    %151 = vmatpush1.msra.mxu0 %v33
    %152 = vmatprep.subr.mxu0 0.0
    %153 = vmatpush1.msra.mxu0 %v34
    %154 = vmatprep.subr.mxu0 0.0
    %155 = vmatpush1.msra.mxu0 0.0
    %156 = vmatprep.subr.mxu0 0.0
    %157 = vmatpush1.msra.mxu0 0.0
    %158 = vmatprep.subr.mxu0 0.0
    %159 = vmatpush1.msra.mxu0 0.0
    %160 = vmatprep.subr.mxu0 0.0
    %161 = vmatpush1.msra.mxu0 0.0
    %162 = vmatprep.subr.mxu0 0.0
    %163 = vmatpush1.msra.mxu0 0.0
    %164 = vmatprep.subr.mxu0 0.0
    %165 = vmatpush1.msra.mxu0 0.0
    %166 = vmatprep.subr.mxu0 0.0
    %167 = vmatpush1.msra.mxu0 0.0
    %168 = vmatprep.subr.mxu0 0.0
    %169 = vmatpush1.msra.mxu0 0.0
    %170 = vmatprep.subr.mxu0 0.0
    %171 = vmatpush1.msra.mxu0 0.0
    %172 = vmatprep.subr.mxu0 0.0
    %173 = vmatpush1.msra.mxu0 0.0
    %174 = vmatprep.subr.mxu0 0.0
    %175 = vmatpush1.msra.mxu0 0.0
    %176 = vmatprep.subr.mxu0 0.0
    %177 = vmatpush1.msra.mxu0 0.0
    %178 = vmatprep.subr.mxu0 0.0
    %179 = vmatpush1.msra.mxu0 0.0
    %180 = vmatprep.subr.mxu0 0.0
    %181 = vmatpush1.msra.mxu0 0.0
    %182 = vmatprep.subr.mxu0 0.0
    %183 = vmatpush1.msra.mxu0 0.0
    %184 = vmatprep.subr.mxu0 0.0
    %185 = vmatpush1.msra.mxu0 0.0
    %186 = vmatprep.mubr.f32.mxu0 0.0
    %187 = vmatmul.mubr.f32.gmra.mrb[0].mxu0 %v18
    %v188 = vpop.f32.mrb[0].mxu0
    %v189 = vadd.f32 %v119, %v188
    %v190 = vpop.f32.mrb[0].mxu0
    %191 = vdwg.mxu0
    %v192 = vld [vmem:[%s3] sm:$0x1]
    %v194 = vlaneseq
    %v195 = vshrl.u32 %v194, 7
    %v196 = vsub.s32 0, %v195
    %v197 = vrot.slane %v192, %v196
    %v199 = vadd.f32 %v189, %v197
    %vm200 = vcmask 48128
    %201 = vst.msk [vmem:[#allocation2] sm:$0xff] %vm200, %v199
    // Predicated region
    $region18: #{tpu_custom_call.1} parent=1 // pred_check
      _
    $region19: #{tpu_custom_call.1} parent=1 // pred_check_branch
      %203 = sbr.rel (0) target = $region21
    $region20: #{tpu_custom_call.1} parent=1 // pred_region
      %s205 = ssub.s32 128, 128
      %206 = vsyncadd [#allocation3], %s205
      %s208 = sshll.u32 [#allocation2], 4
      %s209 = int_to_ptr.vmem [resolvable:$true] %s208
      %211 = dma.vmem_to_hbm [thread:$0]  %s209, 128, %s4, [#allocation3]
    $region21: #{tpu_custom_call.1} parent=1 // pred_fallthru
      _
    // Predicated region
    $region22: #{tpu_custom_call.1} parent=1 // pred_check
      _
    $region23: #{tpu_custom_call.1} parent=1 // pred_check_branch
      %213 = sbr.rel (0) target = $region25
    $region24: #{tpu_custom_call.1} parent=1 // pred_region
      %214 = dma.done [#allocation3], 128
    $region25: #{tpu_custom_call.1} parent=1 // pred_fallthru
      _
    %215 = vsyncpa [#allocation3], 1

</llo_original>
